<compile_context>
chip_gen: v7x
topology: tpu7x:2x2x1
jax: 0.10.0
libtpu: 0.0.40
codegen_flags: <defaults>
</compile_context>

<pallas_src>
import jax
import jax.numpy as jnp
from jax.experimental import pallas as pl
from jax.experimental.pallas import tpu as pltpu  # noqa: F401  (TPU backend)


def rppg_kernel(x_ref, wbbt_ref, bbb_ref, whp_ref, bhp_ref, o_ref):
    # x_ref   : (N, Cin, S)   NCHW with spatial flattened; S on the lane axis.
    # wbbt_ref: (Ch, Cin)     backbone 1x1-conv weight, transposed.
    # bbb_ref : (Ch, 1)       backbone bias (column).
    # whp_ref : (Ch, Dpad)    head weight, pre-scaled by 1/S, lane-padded.
    # bhp_ref : (1, Dpad)     head bias, lane-padded.
    # o_ref   : (N, Dpad)     lane-dense output slab.
    N, Cin, S = x_ref.shape
    Ch = wbbt_ref.shape[0]

    w_bbt = wbbt_ref[...]                              # (Ch, Cin)
    w_h = whp_ref[...]                                 # (Ch, Dpad), carries 1/S
    b_h = bhp_ref[...]                                 # (1, Dpad)

    # Loop-invariant broadcasts hoisted out of the batch loop: JAX does not CSE
    # broadcast_in_dim, so emit each weight-column plane (and the bias plane)
    # exactly once instead of once per (n, c) pair.
    w_planes = [jnp.broadcast_to(w_bbt[:, c:c + 1], (Ch, S)) for c in range(Cin)]
    b_plane = jnp.broadcast_to(bbb_ref[...], (Ch, S))  # (Ch, S)

    out_rows = []
    for n in range(N):                                 # static batch unroll
        xb = x_ref[n]                                  # (Cin, S)

        # backbone 1x1 conv: Cin unrolled broadcast-FMAs on the VPU in a
        # lane-dense (Ch, S) layout (a K=Cin MXU pass would be ~97% idle).
        # TODO(synk): move the per-(n,c) activation-row replication into the vld
        #             path with a stride-0 sublane-broadcast load
        #             (x_ref.at[n][pl.ds(c, Ch, stride=0), :]) once stride=0
        #             slices are available in this JAX version.
        h = w_planes[0] * jnp.broadcast_to(xb[0:1, :], (Ch, S))
        for c in range(1, Cin):                        # static channel unroll
            h = h + w_planes[c] * jnp.broadcast_to(xb[c:c + 1, :], (Ch, S))
        h = jnp.maximum(h + b_plane, 0.0)              # bias + ReLU on the VPU

        # head: global spatial mean pool (== flatten(2).mean(-1); the 1/S scale
        # is folded into w_h) followed by the linear regressor.  At this tiny
        # N/Ch the linear layer is a VPU multiply + XLU sublane reduce instead
        # of an almost-idle MXU matvec (no weight-push / result-pop latency).
        pooled_col = jnp.sum(h, axis=1, keepdims=True)               # (Ch, 1)
        out_rows.append(jnp.sum(pooled_col * w_h, axis=0, keepdims=True))  # (1, Dpad)

    # One batched bias-add and ONE full (N, Dpad) lane-dense store.
    out = jnp.concatenate(out_rows, axis=0) + b_h                    # (N, Dpad)
    o_ref[...] = out.astype(o_ref.dtype)


def make_rppg_forward(w_bb, b_bb, w_h, b_h, *, spatial_size):
    """One-time (model-init) parameter prep; returns a jitted x -> out closure.

    Moving the transpose / reshape / 1/S fold / lane padding out of the per-call
    wrapper removes several tiny per-forward XLA ops + HBM round trips that cost
    as much as the kernel itself at these sizes.
    """
    Cin, Ch = w_bb.shape
    Dout = w_h.shape[1]
    Dpad = pl.cdiv(Dout, 128) * 128                    # lane-dense output width

    w_bbt = jnp.asarray(w_bb, jnp.float32).T                          # (Ch, Cin)
    b_bbc = jnp.asarray(b_bb, jnp.float32).reshape(Ch, 1)             # (Ch, 1)
    w_hp = jnp.zeros((Ch, Dpad), jnp.float32).at[:, :Dout].set(
        jnp.asarray(w_h, jnp.float32) / spatial_size)                 # fold mean 1/S
    b_hp = jnp.zeros((1, Dpad), jnp.float32).at[:, :Dout].set(
        jnp.asarray(b_h, jnp.float32))

    @jax.jit
    def forward(x_nchw):
        N, Cin_x, H, W = x_nchw.shape
        assert Cin_x == Cin and H * W == spatial_size
        # Free reshape of contiguous NCHW -> (N, Cin, S); S lands on lanes.
        x_k = x_nchw.reshape(N, Cin, H * W)
        out_p = pl.pallas_call(
            rppg_kernel,
            out_shape=jax.ShapeDtypeStruct((N, Dpad), jnp.float32),
            # gridless: the whole problem is a few KiB -> one step, no pipeline
            # prologue/flush overhead (see TODO(synk) above for the scaled-up
            # gridded / bf16 path).
        )(x_k, w_bbt, b_bbc, w_hp, b_hp)
        return out_p[:, :Dout]

    return forward


def rppg_reference(x_nchw, w_bb, b_bb, w_h, b_h):
    """Pure-JAX reference of the same forward (mirrors the PyTorch semantics)."""
    N, Cin, H, W = x_nchw.shape
    x = jnp.transpose(x_nchw, (0, 2, 3, 1)).reshape(N, H * W, Cin)
    h = jnp.maximum(x @ w_bb + b_bb[None, None, :], 0.0)       # backbone
    pooled = h.mean(axis=1)                                    # flatten(2).mean(-1)
    return pooled @ w_h + b_h[None, :]                         # head


if __name__ == "__main__":
    # small shapes consistent with the forward: batch=2, channels=4, spatial=16
    N, Cin, H, W = 2, 4, 16, 16
    Ch, Dout = 32, 8

    key = jax.random.PRNGKey(0)
    kx, kw1, kb1, kw2, kb2 = jax.random.split(key, 5)

    x = jax.random.normal(kx, (N, Cin, H, W), dtype=jnp.float32)
    # deterministic parameter init (synthetic, no checkpoint load)
    w_bb = jax.random.normal(kw1, (Cin, Ch), dtype=jnp.float32) * 0.1
    b_bb = jax.random.normal(kb1, (Ch,), dtype=jnp.float32) * 0.1
    w_h = jax.random.normal(kw2, (Ch, Dout), dtype=jnp.float32) * 0.1
    b_h = jax.random.normal(kb2, (Dout,), dtype=jnp.float32) * 0.1

    forward = make_rppg_forward(w_bb, b_bb, w_h, b_h, spatial_size=H * W)
    out = jax.block_until_ready(forward(x))

    ref = rppg_reference(x, w_bb, b_bb, w_h, b_h)
    assert out.shape == (N, Dout)
    assert jnp.allclose(out, ref, atol=1e-4, rtol=1e-4)

    print("KERNEL_OK")
</pallas_src>

<mosaic_0001>
module attributes {stable_mosaic.version = 11 : i64} {
  func.func @rppg_kernel(%arg0: memref<2x4x256xf32, #tpu.memory_space<vmem>>, %arg1: memref<32x4xf32, #tpu.memory_space<vmem>>, %arg2: memref<32x1xf32, #tpu.memory_space<vmem>>, %arg3: memref<32x128xf32, #tpu.memory_space<vmem>>, %arg4: memref<1x128xf32, #tpu.memory_space<vmem>>, %arg5: memref<2x128xf32, #tpu.memory_space<vmem>>) attributes {dimension_semantics = [], scalar_prefetch = 0 : i64, scratch_operands = 0 : i64, tpu.core_type = #tpu.core_type<tc>} {
    %c0 = arith.constant 0 : index
    %c0_0 = arith.constant 0 : index
    %0 = vector.load %arg1[%c0, %c0_0] : memref<32x4xf32, #tpu.memory_space<vmem>>, vector<32x4xf32>
    %c0_1 = arith.constant 0 : index
    %c0_2 = arith.constant 0 : index
    %1 = vector.load %arg3[%c0_1, %c0_2] : memref<32x128xf32, #tpu.memory_space<vmem>>, vector<32x128xf32>
    %c0_3 = arith.constant 0 : index
    %c0_4 = arith.constant 0 : index
    %2 = vector.load %arg4[%c0_3, %c0_4] : memref<1x128xf32, #tpu.memory_space<vmem>>, vector<1x128xf32>
    %3 = vector.extract_strided_slice %0 {offsets = [0, 0], sizes = [32, 1], strides = [1, 1]} : vector<32x4xf32> to vector<32x1xf32>
    %4 = vector.shape_cast %3 : vector<32x1xf32> to vector<32x1xf32>
    %5 = vector.broadcast %4 : vector<32x1xf32> to vector<32x256xf32>
    %6 = vector.extract_strided_slice %0 {offsets = [0, 1], sizes = [32, 1], strides = [1, 1]} : vector<32x4xf32> to vector<32x1xf32>
    %7 = vector.shape_cast %6 : vector<32x1xf32> to vector<32x1xf32>
    %8 = vector.broadcast %7 : vector<32x1xf32> to vector<32x256xf32>
    %9 = vector.extract_strided_slice %0 {offsets = [0, 2], sizes = [32, 1], strides = [1, 1]} : vector<32x4xf32> to vector<32x1xf32>
    %10 = vector.shape_cast %9 : vector<32x1xf32> to vector<32x1xf32>
    %11 = vector.broadcast %10 : vector<32x1xf32> to vector<32x256xf32>
    %12 = vector.extract_strided_slice %0 {offsets = [0, 3], sizes = [32, 1], strides = [1, 1]} : vector<32x4xf32> to vector<32x1xf32>
    %13 = vector.shape_cast %12 : vector<32x1xf32> to vector<32x1xf32>
    %14 = vector.broadcast %13 : vector<32x1xf32> to vector<32x256xf32>
    %c0_5 = arith.constant 0 : index
    %c0_6 = arith.constant 0 : index
    %15 = vector.load %arg2[%c0_5, %c0_6] : memref<32x1xf32, #tpu.memory_space<vmem>>, vector<32x1xf32>
    %16 = vector.shape_cast %15 : vector<32x1xf32> to vector<32x1xf32>
    %17 = vector.broadcast %16 : vector<32x1xf32> to vector<32x256xf32>
    %c0_7 = arith.constant 0 : index
    %c0_8 = arith.constant 0 : index
    %c0_9 = arith.constant 0 : index
    %18 = vector.load %arg0[%c0_7, %c0_8, %c0_9] : memref<2x4x256xf32, #tpu.memory_space<vmem>>, vector<1x4x256xf32>
    %19 = vector.shape_cast %18 : vector<1x4x256xf32> to vector<4x256xf32>
    %20 = vector.extract_strided_slice %19 {offsets = [0, 0], sizes = [1, 256], strides = [1, 1]} : vector<4x256xf32> to vector<1x256xf32>
    %21 = vector.shape_cast %20 : vector<1x256xf32> to vector<1x256xf32>
    %22 = vector.broadcast %21 : vector<1x256xf32> to vector<32x256xf32>
    %23 = arith.mulf %5, %22 : vector<32x256xf32>
    %24 = vector.extract_strided_slice %19 {offsets = [1, 0], sizes = [1, 256], strides = [1, 1]} : vector<4x256xf32> to vector<1x256xf32>
    %25 = vector.shape_cast %24 : vector<1x256xf32> to vector<1x256xf32>
    %26 = vector.broadcast %25 : vector<1x256xf32> to vector<32x256xf32>
    %27 = arith.mulf %8, %26 : vector<32x256xf32>
    %28 = arith.addf %23, %27 : vector<32x256xf32>
    %29 = vector.extract_strided_slice %19 {offsets = [2, 0], sizes = [1, 256], strides = [1, 1]} : vector<4x256xf32> to vector<1x256xf32>
    %30 = vector.shape_cast %29 : vector<1x256xf32> to vector<1x256xf32>
    %31 = vector.broadcast %30 : vector<1x256xf32> to vector<32x256xf32>
    %32 = arith.mulf %11, %31 : vector<32x256xf32>
    %33 = arith.addf %28, %32 : vector<32x256xf32>
    %34 = vector.extract_strided_slice %19 {offsets = [3, 0], sizes = [1, 256], strides = [1, 1]} : vector<4x256xf32> to vector<1x256xf32>
    %35 = vector.shape_cast %34 : vector<1x256xf32> to vector<1x256xf32>
    %36 = vector.broadcast %35 : vector<1x256xf32> to vector<32x256xf32>
    %37 = arith.mulf %14, %36 : vector<32x256xf32>
    %38 = arith.addf %33, %37 : vector<32x256xf32>
    %39 = arith.addf %38, %17 : vector<32x256xf32>
    %cst = arith.constant 0.000000e+00 : f32
    %40 = vector.broadcast %cst : f32 to vector<32x256xf32>
    %41 = arith.maximumf %39, %40 : vector<32x256xf32>
    %cst_10 = arith.constant dense<0.000000e+00> : vector<32xf32>
    %42 = vector.multi_reduction <add>, %41, %cst_10 [1] : vector<32x256xf32> to vector<32xf32>
    %43 = vector.shape_cast %42 : vector<32xf32> to vector<32x1xf32>
    %44 = vector.broadcast %43 : vector<32x1xf32> to vector<32x128xf32>
    %45 = arith.mulf %44, %1 : vector<32x128xf32>
    %cst_11 = arith.constant dense<0.000000e+00> : vector<128xf32>
    %46 = vector.multi_reduction <add>, %45, %cst_11 [0] : vector<32x128xf32> to vector<128xf32>
    %47 = vector.shape_cast %46 : vector<128xf32> to vector<1x128xf32>
    %c1 = arith.constant 1 : index
    %c0_12 = arith.constant 0 : index
    %c0_13 = arith.constant 0 : index
    %48 = vector.load %arg0[%c1, %c0_12, %c0_13] : memref<2x4x256xf32, #tpu.memory_space<vmem>>, vector<1x4x256xf32>
    %49 = vector.shape_cast %48 : vector<1x4x256xf32> to vector<4x256xf32>
    %50 = vector.extract_strided_slice %49 {offsets = [0, 0], sizes = [1, 256], strides = [1, 1]} : vector<4x256xf32> to vector<1x256xf32>
    %51 = vector.shape_cast %50 : vector<1x256xf32> to vector<1x256xf32>
    %52 = vector.broadcast %51 : vector<1x256xf32> to vector<32x256xf32>
    %53 = arith.mulf %5, %52 : vector<32x256xf32>
    %54 = vector.extract_strided_slice %49 {offsets = [1, 0], sizes = [1, 256], strides = [1, 1]} : vector<4x256xf32> to vector<1x256xf32>
    %55 = vector.shape_cast %54 : vector<1x256xf32> to vector<1x256xf32>
    %56 = vector.broadcast %55 : vector<1x256xf32> to vector<32x256xf32>
    %57 = arith.mulf %8, %56 : vector<32x256xf32>
    %58 = arith.addf %53, %57 : vector<32x256xf32>
    %59 = vector.extract_strided_slice %49 {offsets = [2, 0], sizes = [1, 256], strides = [1, 1]} : vector<4x256xf32> to vector<1x256xf32>
    %60 = vector.shape_cast %59 : vector<1x256xf32> to vector<1x256xf32>
    %61 = vector.broadcast %60 : vector<1x256xf32> to vector<32x256xf32>
    %62 = arith.mulf %11, %61 : vector<32x256xf32>
    %63 = arith.addf %58, %62 : vector<32x256xf32>
    %64 = vector.extract_strided_slice %49 {offsets = [3, 0], sizes = [1, 256], strides = [1, 1]} : vector<4x256xf32> to vector<1x256xf32>
    %65 = vector.shape_cast %64 : vector<1x256xf32> to vector<1x256xf32>
    %66 = vector.broadcast %65 : vector<1x256xf32> to vector<32x256xf32>
    %67 = arith.mulf %14, %66 : vector<32x256xf32>
    %68 = arith.addf %63, %67 : vector<32x256xf32>
    %69 = arith.addf %68, %17 : vector<32x256xf32>
    %cst_14 = arith.constant 0.000000e+00 : f32
    %70 = vector.broadcast %cst_14 : f32 to vector<32x256xf32>
    %71 = arith.maximumf %69, %70 : vector<32x256xf32>
    %cst_15 = arith.constant dense<0.000000e+00> : vector<32xf32>
    %72 = vector.multi_reduction <add>, %71, %cst_15 [1] : vector<32x256xf32> to vector<32xf32>
    %73 = vector.shape_cast %72 : vector<32xf32> to vector<32x1xf32>
    %74 = vector.broadcast %73 : vector<32x1xf32> to vector<32x128xf32>
    %75 = arith.mulf %74, %1 : vector<32x128xf32>
    %cst_16 = arith.constant dense<0.000000e+00> : vector<128xf32>
    %76 = vector.multi_reduction <add>, %75, %cst_16 [0] : vector<32x128xf32> to vector<128xf32>
    %77 = vector.shape_cast %76 : vector<128xf32> to vector<1x128xf32>
    %78 = tpu.concatenate %47, %77 in 0 : vector<1x128xf32>, vector<1x128xf32> -> vector<2x128xf32>
    %79 = vector.broadcast %2 : vector<1x128xf32> to vector<2x128xf32>
    %80 = arith.addf %78, %79 : vector<2x128xf32>
    %c0_17 = arith.constant 0 : index
    %c0_18 = arith.constant 0 : index
    %81 = vector.load %arg5[%c0_17, %c0_18] : memref<2x128xf32, #tpu.memory_space<vmem>>, vector<2x128xf32>
    tpu.vector_store %arg5[%c0_17, %c0_18], %80 {strides = array<i32>} : memref<2x128xf32, #tpu.memory_space<vmem>>, vector<2x128xf32>,
    return
  }
}

</mosaic_0001>

<llo_original>
// kernel: forward.1
$region0: #{forward.1}
  #allocation0 [shape = 'u32[]', space=smem, size = 0x4, offset = 0x4, fixed_abs, tag = 'smem constant byte address 0x4 - core index']
  #allocation1 [shape = 'u32[144,128]{1,0:T(1,128)}', space=vmem, size = 0x12000, scoped, tag = 'internal scratch']
  %s0 = inlined_call_operand.vmem [shape: f32[2,4,256], index: 0, kind: input, shape index: {}]
  %s1 = inlined_call_operand.vmem [shape: f32[32,4], index: 1, kind: input, shape index: {}]
  %s2 = inlined_call_operand.vmem [shape: f32[32,1], index: 2, kind: input, shape index: {}]
  %s3 = inlined_call_operand.vmem [shape: f32[32,128], index: 3, kind: input, shape index: {}]
  %s4 = inlined_call_operand.vmem [shape: f32[1,128], index: 4, kind: input, shape index: {}]
  %s5 = inlined_call_operand.hbm [shape: f32[2,128], index: 5, kind: output, shape index: {}]
  %s6 = sld [smem:[#allocation0]]
  $region30: #{forward.1} parent=0
    _
  %s8 = ssub.s32 1, %s6
  %s9 = scalar_select 0, %s8, %s6
  $region1: #{forward.1} parent=0
    #allocation2 [shape = 'u8[1024]{0}', space=vmem, size = 0x400, scoped, tag = 'output window, operand 0, single buffered']
    #allocation3 [shape = 's32[1]{0}', space=sflag, size = 0x4, scoped, tag = 'scoped memory for forward.1']
    %10 = vsyncpa [#allocation3], 0
    // Predicated region
    $region2: #{forward.1} parent=1 // pred_check
      _
    $region3: #{forward.1} parent=1 // pred_check_branch
      %12 = sbr.rel (0) target = $region5
    $region4: #{forward.1} parent=1 // pred_region
      _
    $region5: #{forward.1} parent=1 // pred_fallthru
      _
    // Predicated region
    $region6: #{forward.1} parent=1 // pred_check
      _
    $region7: #{forward.1} parent=1 // pred_check_branch
      %14 = sbr.rel (0) target = $region9
    $region8: #{forward.1} parent=1 // pred_region
      _
    $region9: #{forward.1} parent=1 // pred_fallthru
      _
    // Predicated region
    $region10: #{forward.1} parent=1 // pred_check
      _
    $region11: #{forward.1} parent=1 // pred_check_branch
      %16 = sbr.rel (0) target = $region13
    $region12: #{forward.1} parent=1 // pred_region
      _
    $region13: #{forward.1} parent=1 // pred_fallthru
      _
    // Predicated region
    $region14: #{forward.1} parent=1 // pred_check
      _
    $region15: #{forward.1} parent=1 // pred_check_branch
      %18 = sbr.rel (0) target = $region17
    $region16: #{forward.1} parent=1 // pred_region
      _
    $region17: #{forward.1} parent=1 // pred_fallthru
      _
    // Predicated region
    $region18: #{forward.1} parent=1 // pred_check
      _
    $region19: #{forward.1} parent=1 // pred_check_branch
      %20 = sbr.rel (0) target = $region21
    $region20: #{forward.1} parent=1 // pred_region
      _
    $region21: #{forward.1} parent=1 // pred_fallthru
      _
    %v21 = vld [vmem:[%s1] sm:$0xff]
    %v22 = vld [vmem:[%s1 + $0x8] sm:$0xff]
    %v23 = vld [vmem:[%s1 + $0x10] sm:$0xff]
    %v24 = vld [vmem:[%s1 + $0x18] sm:$0xff]
    %v25 = vld [vmem:[%s3] sm:$0xff]
    %v26 = vld [vmem:[%s3 + $0x8] sm:$0xff]
    %v27 = vld [vmem:[%s3 + $0x10] sm:$0xff]
    %v28 = vld [vmem:[%s3 + $0x18] sm:$0xff]
    %v29 = vld [vmem:[%s4] sm:$0x1]
    %31 = vset.pattern.permute.xlu0 0
    %32 = vperm.xlu0 %31, %v21
    %v33 = vpop.permute.xlu0 %32
    %36 = vset.pattern.permute.xlu0 0
    %37 = vperm.xlu0 %36, %v22
    %v38 = vpop.permute.xlu0 %37
    %41 = vset.pattern.permute.xlu0 0
    %42 = vperm.xlu0 %41, %v23
    %v43 = vpop.permute.xlu0 %42
    %46 = vset.pattern.permute.xlu0 0
    %47 = vperm.xlu0 %46, %v24
    %v48 = vpop.permute.xlu0 %47
    %50 = vset.pattern.permute.xlu0 1
    %51 = vperm.xlu0 %50, %v21
    %v52 = vpop.permute.xlu0 %51
    %54 = vset.pattern.permute.xlu0 1
    %55 = vperm.xlu0 %54, %v22
    %v56 = vpop.permute.xlu0 %55
    %58 = vset.pattern.permute.xlu0 1
    %59 = vperm.xlu0 %58, %v23
    %v60 = vpop.permute.xlu0 %59
    %62 = vset.pattern.permute.xlu0 1
    %63 = vperm.xlu0 %62, %v24
    %v64 = vpop.permute.xlu0 %63
    %66 = vset.pattern.permute.xlu0 2
    %67 = vperm.xlu0 %66, %v21
    %v68 = vpop.permute.xlu0 %67
    %70 = vset.pattern.permute.xlu0 2
    %71 = vperm.xlu0 %70, %v22
    %v72 = vpop.permute.xlu0 %71
    %74 = vset.pattern.permute.xlu0 2
    %75 = vperm.xlu0 %74, %v23
    %v76 = vpop.permute.xlu0 %75
    %78 = vset.pattern.permute.xlu0 2
    %79 = vperm.xlu0 %78, %v24
    %v80 = vpop.permute.xlu0 %79
    %82 = vset.pattern.permute.xlu0 3
    %83 = vperm.xlu0 %82, %v21
    %v84 = vpop.permute.xlu0 %83
    %86 = vset.pattern.permute.xlu0 3
    %87 = vperm.xlu0 %86, %v22
    %v88 = vpop.permute.xlu0 %87
    %90 = vset.pattern.permute.xlu0 3
    %91 = vperm.xlu0 %90, %v23
    %v92 = vpop.permute.xlu0 %91
    %94 = vset.pattern.permute.xlu0 3
    %95 = vperm.xlu0 %94, %v24
    %v96 = vpop.permute.xlu0 %95
    %v98 = vld [vmem:[%s2] sm:$0xff]
    %v99 = vld [vmem:[%s2 + $0x8] sm:$0xff]
    %v100 = vld [vmem:[%s2 + $0x10] sm:$0xff]
    %v101 = vld [vmem:[%s2 + $0x18] sm:$0xff]
    %103 = vset.pattern.permute.xlu0 0
    %104 = vperm.xlu0 %103, %v98
    %v105 = vpop.permute.xlu0 %104
    %108 = vset.pattern.permute.xlu0 0
    %109 = vperm.xlu0 %108, %v99
    %v110 = vpop.permute.xlu0 %109
    %113 = vset.pattern.permute.xlu0 0
    %114 = vperm.xlu0 %113, %v100
    %v115 = vpop.permute.xlu0 %114
    %118 = vset.pattern.permute.xlu0 0
    %119 = vperm.xlu0 %118, %v101
    %v120 = vpop.permute.xlu0 %119
    %v122 = vld [vmem:[%s0] sm:$0xff]
    %v124 = vlaneseq
    %v125 = vshrl.u32 %v124, 7
    %v126 = vsub.s32 0, %v125
    %v127 = vrot.slane %v122, %v126
    %v128 = vlaneseq
    %v129 = vshrl.u32 %v128, 7
    %v130 = vsub.s32 4, %v129
    %v131 = vrot.slane %v122, %v130
    %v134 = vlaneseq
    %v135 = vshrl.u32 %v134, 7
    %v136 = vsub.s32 0, %v135
    %v137 = vrot.slane %v127, %v136
    %v138 = vlaneseq
    %v139 = vshrl.u32 %v138, 7
    %v140 = vsub.s32 0, %v139
    %v141 = vrot.slane %v131, %v140
    %v142 = vmul.f32 %v33, %v137
    %v143 = vmul.f32 %v33, %v141
    %v144 = vmul.f32 %v38, %v137
    %v145 = vmul.f32 %v38, %v141
    %v146 = vmul.f32 %v43, %v137
    %v147 = vmul.f32 %v43, %v141
    %v148 = vmul.f32 %v48, %v137
    %v149 = vmul.f32 %v48, %v141
    %v150 = vlaneseq
    %v151 = vshrl.u32 %v150, 7
    %v152 = vsub.s32 1, %v151
    %v153 = vrot.slane %v122, %v152
    %v154 = vlaneseq
    %v155 = vshrl.u32 %v154, 7
    %v156 = vsub.s32 5, %v155
    %v157 = vrot.slane %v122, %v156
    %v160 = vlaneseq
    %v161 = vshrl.u32 %v160, 7
    %v162 = vsub.s32 1, %v161
    %v163 = vrot.slane %v153, %v162
    %v164 = vlaneseq
    %v165 = vshrl.u32 %v164, 7
    %v166 = vsub.s32 1, %v165
    %v167 = vrot.slane %v157, %v166
    %v168 = vmul.f32 %v52, %v163
    %v169 = vmul.f32 %v52, %v167
    %v170 = vmul.f32 %v56, %v163
    %v171 = vmul.f32 %v56, %v167
    %v172 = vmul.f32 %v60, %v163
    %v173 = vmul.f32 %v60, %v167
    %v174 = vmul.f32 %v64, %v163
    %v175 = vmul.f32 %v64, %v167
    %v176 = vadd.f32 %v142, %v168
    %v177 = vadd.f32 %v143, %v169
    %v178 = vadd.f32 %v144, %v170
    %v179 = vadd.f32 %v145, %v171
    %v180 = vadd.f32 %v146, %v172
    %v181 = vadd.f32 %v147, %v173
    %v182 = vadd.f32 %v148, %v174
    %v183 = vadd.f32 %v149, %v175
    %v184 = vlaneseq
    %v185 = vshrl.u32 %v184, 7
    %v186 = vsub.s32 2, %v185
    %v187 = vrot.slane %v122, %v186
    %v188 = vlaneseq
    %v189 = vshrl.u32 %v188, 7
    %v190 = vsub.s32 6, %v189
    %v191 = vrot.slane %v122, %v190
    %v194 = vlaneseq
    %v195 = vshrl.u32 %v194, 7
    %v196 = vsub.s32 2, %v195
    %v197 = vrot.slane %v187, %v196
    %v198 = vlaneseq
    %v199 = vshrl.u32 %v198, 7
    %v200 = vsub.s32 2, %v199
    %v201 = vrot.slane %v191, %v200
    %v202 = vmul.f32 %v68, %v197
    %v203 = vmul.f32 %v68, %v201
    %v204 = vmul.f32 %v72, %v197
    %v205 = vmul.f32 %v72, %v201
    %v206 = vmul.f32 %v76, %v197
    %v207 = vmul.f32 %v76, %v201
    %v208 = vmul.f32 %v80, %v197
    %v209 = vmul.f32 %v80, %v201
    %v210 = vadd.f32 %v176, %v202
    %v211 = vadd.f32 %v177, %v203
    %v212 = vadd.f32 %v178, %v204
    %v213 = vadd.f32 %v179, %v205
    %v214 = vadd.f32 %v180, %v206
    %v215 = vadd.f32 %v181, %v207
    %v216 = vadd.f32 %v182, %v208
    %v217 = vadd.f32 %v183, %v209
    %v218 = vlaneseq
    %v219 = vshrl.u32 %v218, 7
    %v220 = vsub.s32 3, %v219
    %v221 = vrot.slane %v122, %v220
    %v222 = vlaneseq
    %v223 = vshrl.u32 %v222, 7
    %v224 = vsub.s32 7, %v223
    %v225 = vrot.slane %v122, %v224
    %v228 = vlaneseq
    %v229 = vshrl.u32 %v228, 7
    %v230 = vsub.s32 3, %v229
    %v231 = vrot.slane %v221, %v230
    %v232 = vlaneseq
    %v233 = vshrl.u32 %v232, 7
    %v234 = vsub.s32 3, %v233
    %v235 = vrot.slane %v225, %v234
    %v236 = vmul.f32 %v84, %v231
    %v237 = vmul.f32 %v84, %v235
    %v238 = vmul.f32 %v88, %v231
    %v239 = vmul.f32 %v88, %v235
    %v240 = vmul.f32 %v92, %v231
    %v241 = vmul.f32 %v92, %v235
    %v242 = vmul.f32 %v96, %v231
    %v243 = vmul.f32 %v96, %v235
    %v244 = vadd.f32 %v210, %v236
    %v245 = vadd.f32 %v211, %v237
    %v246 = vadd.f32 %v212, %v238
    %v247 = vadd.f32 %v213, %v239
    %v248 = vadd.f32 %v214, %v240
    %v249 = vadd.f32 %v215, %v241
    %v250 = vadd.f32 %v216, %v242
    %v251 = vadd.f32 %v217, %v243
    %v252 = vadd.f32 %v244, %v105
    %v253 = vadd.f32 %v245, %v105
    %v254 = vadd.f32 %v246, %v110
    %v255 = vadd.f32 %v247, %v110
    %v256 = vadd.f32 %v248, %v115
    %v257 = vadd.f32 %v249, %v115
    %v258 = vadd.f32 %v250, %v120
    %v259 = vadd.f32 %v251, %v120
    %v260 = vmax.f32 %v252, 0.0
    %v261 = vmax.f32 %v253, 0.0
    %v262 = vmax.f32 %v254, 0.0
    %v263 = vmax.f32 %v255, 0.0
    %v264 = vmax.f32 %v256, 0.0
    %v265 = vmax.f32 %v257, 0.0
    %v266 = vmax.f32 %v258, 0.0
    %v267 = vmax.f32 %v259, 0.0
    %v268 = vadd.f32 %v260, %v261
    %269 = vadd.xlane.f32.xlu0 %v268
    %v270 = vpop.xlane.xlu0 %269
    %v271 = vadd.f32 %v262, %v263
    %272 = vadd.xlane.f32.xlu0 %v271
    %v273 = vpop.xlane.xlu0 %272
    %v274 = vadd.f32 %v264, %v265
    %275 = vadd.xlane.f32.xlu0 %v274
    %v276 = vpop.xlane.xlu0 %275
    %v277 = vadd.f32 %v266, %v267
    %278 = vadd.xlane.f32.xlu0 %v277
    %v279 = vpop.xlane.xlu0 %278
    %v280 = vmul.f32 %v270, %v25
    %v281 = vmul.f32 %v273, %v26
    %v282 = vmul.f32 %v276, %v27
    %v283 = vmul.f32 %v279, %v28
    %v284 = vadd.f32 %v280, %v281
    %v285 = vadd.f32 %v284, %v282
    %v286 = vadd.f32 %v285, %v283
    %v287 = vrot.slane %v286, 4
    %v288 = vadd.f32 %v286, %v287
    %v289 = vrot.slane %v288, 2
    %v290 = vadd.f32 %v288, %v289
    %v291 = vrot.slane %v290, 1
    %v292 = vadd.f32 %v290, %v291
    %s293 = scalar_lea.vmem %s0, 8
    %v294 = vld [vmem:[%s293] sm:$0xff]
    %v296 = vlaneseq
    %v297 = vshrl.u32 %v296, 7
    %v298 = vsub.s32 0, %v297
    %v299 = vrot.slane %v294, %v298
    %v300 = vlaneseq
    %v301 = vshrl.u32 %v300, 7
    %v302 = vsub.s32 4, %v301
    %v303 = vrot.slane %v294, %v302
    %v306 = vlaneseq
    %v307 = vshrl.u32 %v306, 7
    %v308 = vsub.s32 0, %v307
    %v309 = vrot.slane %v299, %v308
    %v310 = vlaneseq
    %v311 = vshrl.u32 %v310, 7
    %v312 = vsub.s32 0, %v311
    %v313 = vrot.slane %v303, %v312
    %v314 = vmul.f32 %v33, %v309
    %v315 = vmul.f32 %v33, %v313
    %v316 = vmul.f32 %v38, %v309
    %v317 = vmul.f32 %v38, %v313
    %v318 = vmul.f32 %v43, %v309
    %v319 = vmul.f32 %v43, %v313
    %v320 = vmul.f32 %v48, %v309
    %v321 = vmul.f32 %v48, %v313
    %v322 = vlaneseq
    %v323 = vshrl.u32 %v322, 7
    %v324 = vsub.s32 1, %v323
    %v325 = vrot.slane %v294, %v324
    %v326 = vlaneseq
    %v327 = vshrl.u32 %v326, 7
    %v328 = vsub.s32 5, %v327
    %v329 = vrot.slane %v294, %v328
    %v332 = vlaneseq
    %v333 = vshrl.u32 %v332, 7
    %v334 = vsub.s32 1, %v333
    %v335 = vrot.slane %v325, %v334
    %v336 = vlaneseq
    %v337 = vshrl.u32 %v336, 7
    %v338 = vsub.s32 1, %v337
    %v339 = vrot.slane %v329, %v338
    %v340 = vmul.f32 %v52, %v335
    %v341 = vmul.f32 %v52, %v339
    %v342 = vmul.f32 %v56, %v335
    %v343 = vmul.f32 %v56, %v339
    %v344 = vmul.f32 %v60, %v335
    %v345 = vmul.f32 %v60, %v339
    %v346 = vmul.f32 %v64, %v335
    %v347 = vmul.f32 %v64, %v339
    %v348 = vadd.f32 %v314, %v340
    %v349 = vadd.f32 %v315, %v341
    %v350 = vadd.f32 %v316, %v342
    %v351 = vadd.f32 %v317, %v343
    %v352 = vadd.f32 %v318, %v344
    %v353 = vadd.f32 %v319, %v345
    %v354 = vadd.f32 %v320, %v346
    %v355 = vadd.f32 %v321, %v347
    %v356 = vlaneseq
    %v357 = vshrl.u32 %v356, 7
    %v358 = vsub.s32 2, %v357
    %v359 = vrot.slane %v294, %v358
    %v360 = vlaneseq
    %v361 = vshrl.u32 %v360, 7
    %v362 = vsub.s32 6, %v361
    %v363 = vrot.slane %v294, %v362
    %v366 = vlaneseq
    %v367 = vshrl.u32 %v366, 7
    %v368 = vsub.s32 2, %v367
    %v369 = vrot.slane %v359, %v368
    %v370 = vlaneseq
    %v371 = vshrl.u32 %v370, 7
    %v372 = vsub.s32 2, %v371
    %v373 = vrot.slane %v363, %v372
    %v374 = vmul.f32 %v68, %v369
    %v375 = vmul.f32 %v68, %v373
    %v376 = vmul.f32 %v72, %v369
    %v377 = vmul.f32 %v72, %v373
    %v378 = vmul.f32 %v76, %v369
    %v379 = vmul.f32 %v76, %v373
    %v380 = vmul.f32 %v80, %v369
    %v381 = vmul.f32 %v80, %v373
    %v382 = vadd.f32 %v348, %v374
    %v383 = vadd.f32 %v349, %v375
    %v384 = vadd.f32 %v350, %v376
    %v385 = vadd.f32 %v351, %v377
    %v386 = vadd.f32 %v352, %v378
    %v387 = vadd.f32 %v353, %v379
    %v388 = vadd.f32 %v354, %v380
    %v389 = vadd.f32 %v355, %v381
    %v390 = vlaneseq
    %v391 = vshrl.u32 %v390, 7
    %v392 = vsub.s32 3, %v391
    %v393 = vrot.slane %v294, %v392
    %v394 = vlaneseq
    %v395 = vshrl.u32 %v394, 7
    %v396 = vsub.s32 7, %v395
    %v397 = vrot.slane %v294, %v396
    %v400 = vlaneseq
    %v401 = vshrl.u32 %v400, 7
    %v402 = vsub.s32 3, %v401
    %v403 = vrot.slane %v393, %v402
    %v404 = vlaneseq
    %v405 = vshrl.u32 %v404, 7
    %v406 = vsub.s32 3, %v405
    %v407 = vrot.slane %v397, %v406
    %v408 = vmul.f32 %v84, %v403
    %v409 = vmul.f32 %v84, %v407
    %v410 = vmul.f32 %v88, %v403
    %v411 = vmul.f32 %v88, %v407
    %v412 = vmul.f32 %v92, %v403
    %v413 = vmul.f32 %v92, %v407
    %v414 = vmul.f32 %v96, %v403
    %v415 = vmul.f32 %v96, %v407
    %v416 = vadd.f32 %v382, %v408
    %v417 = vadd.f32 %v383, %v409
    %v418 = vadd.f32 %v384, %v410
    %v419 = vadd.f32 %v385, %v411
    %v420 = vadd.f32 %v386, %v412
    %v421 = vadd.f32 %v387, %v413
    %v422 = vadd.f32 %v388, %v414
    %v423 = vadd.f32 %v389, %v415
    %v424 = vadd.f32 %v416, %v105
    %v425 = vadd.f32 %v417, %v105
    %v426 = vadd.f32 %v418, %v110
    %v427 = vadd.f32 %v419, %v110
    %v428 = vadd.f32 %v420, %v115
    %v429 = vadd.f32 %v421, %v115
    %v430 = vadd.f32 %v422, %v120
    %v431 = vadd.f32 %v423, %v120
    %v432 = vmax.f32 %v424, 0.0
    %v433 = vmax.f32 %v425, 0.0
    %v434 = vmax.f32 %v426, 0.0
    %v435 = vmax.f32 %v427, 0.0
    %v436 = vmax.f32 %v428, 0.0
    %v437 = vmax.f32 %v429, 0.0
    %v438 = vmax.f32 %v430, 0.0
    %v439 = vmax.f32 %v431, 0.0
    %v440 = vadd.f32 %v432, %v433
    %441 = vadd.xlane.f32.xlu0 %v440
    %v442 = vpop.xlane.xlu0 %441
    %v443 = vadd.f32 %v434, %v435
    %444 = vadd.xlane.f32.xlu0 %v443
    %v445 = vpop.xlane.xlu0 %444
    %v446 = vadd.f32 %v436, %v437
    %447 = vadd.xlane.f32.xlu0 %v446
    %v448 = vpop.xlane.xlu0 %447
    %v449 = vadd.f32 %v438, %v439
    %450 = vadd.xlane.f32.xlu0 %v449
    %v451 = vpop.xlane.xlu0 %450
    %v452 = vmul.f32 %v442, %v25
    %v453 = vmul.f32 %v445, %v26
    %v454 = vmul.f32 %v448, %v27
    %v455 = vmul.f32 %v451, %v28
    %v456 = vadd.f32 %v452, %v453
    %v457 = vadd.f32 %v456, %v454
    %v458 = vadd.f32 %v457, %v455
    %v459 = vrot.slane %v458, 4
    %v460 = vadd.f32 %v458, %v459
    %v461 = vrot.slane %v460, 2
    %v462 = vadd.f32 %v460, %v461
    %v463 = vrot.slane %v462, 1
    %v464 = vadd.f32 %v462, %v463
    %vm465 = vcmask 1040384
    %v466 = vsel %vm465, %v292, %v464
    %v468 = vlaneseq
    %v469 = vshrl.u32 %v468, 7
    %v470 = vsub.s32 0, %v469
    %v471 = vrot.slane %v29, %v470
    %v473 = vadd.f32 %v466, %v471
    %474 = vst [vmem:[#allocation2] sm:$0x3] %v473
    // Predicated region
    $region22: #{forward.1} parent=1 // pred_check
      _
    $region23: #{forward.1} parent=1 // pred_check_branch
      %476 = sbr.rel (0) target = $region25
    $region24: #{forward.1} parent=1 // pred_region
      %s478 = ssub.s32 32, 32
      %479 = vsyncadd [#allocation3], %s478
      %s481 = sshll.u32 [#allocation2], 4
      %s482 = int_to_ptr.vmem [resolvable:$true] %s481
      %484 = dma.vmem_to_hbm [thread:$0]  %s482, 32, %s5, [#allocation3]
    $region25: #{forward.1} parent=1 // pred_fallthru
      _
    // Predicated region
    $region26: #{forward.1} parent=1 // pred_check
      _
    $region27: #{forward.1} parent=1 // pred_check_branch
      %486 = sbr.rel (0) target = $region29
    $region28: #{forward.1} parent=1 // pred_region
      %487 = dma.done [#allocation3], 32
    $region29: #{forward.1} parent=1 // pred_fallthru
      _
    %488 = vsyncpa [#allocation3], 1

</llo_original>
